<compile_context>
chip_gen: v7x
topology: tpu7x:2x2x1
jax: 0.10.0
libtpu: 0.0.40
codegen_flags: <defaults>
</compile_context>

<pallas_src>
import jax
import jax.numpy as jnp
from jax.experimental import pallas as pl
from jax.experimental.pallas import tpu as pltpu

_VMEM_LIMIT = 64 * 1024 * 1024


def _pick_block(dim, target, align):
    """Largest block <= target that divides dim and is a multiple of `align`;
    falls back to the full dim (always a legal block)."""
    if dim <= target:
        return dim
    t = (target // align) * align
    while t >= align:
        if dim % t == 0:
            return t
        t -= align
    return dim


# ----------------------------- tiled matmul -----------------------------

def _matmul_kernel(a_ref, b_ref, o_ref, acc_ref):
    @pl.when(pl.program_id(2) == 0)
    def _():
        acc_ref[...] = jnp.zeros_like(acc_ref)

    acc_ref[...] += jnp.dot(a_ref[...], b_ref[...],
                            preferred_element_type=jnp.float32)

    @pl.when(pl.program_id(2) == pl.num_programs(2) - 1)
    def _():
        o_ref[...] = acc_ref[...].astype(o_ref.dtype)


def matmul(a, b, out_dtype=jnp.float32, tm=256, tn=256, tk=512):
    """(M, K) @ (K, N) -> (M, N). bf16 MXU inputs, f32 accumulate, tiled grid."""
    M, K = a.shape
    K2, N = b.shape
    assert K == K2
    a = a.astype(jnp.bfloat16)
    b = b.astype(jnp.bfloat16)
    bm = _pick_block(M, tm, 8)
    bn = _pick_block(N, tn, 128)
    bk = _pick_block(K, tk, 128)
    return pl.pallas_call(
        _matmul_kernel,
        out_shape=jax.ShapeDtypeStruct((M, N), out_dtype),
        grid=(M // bm, N // bn, K // bk),
        in_specs=[pl.BlockSpec((bm, bk), lambda i, j, k: (i, k)),
                  pl.BlockSpec((bk, bn), lambda i, j, k: (k, j))],
        out_specs=pl.BlockSpec((bm, bn), lambda i, j, k: (i, j)),
        scratch_shapes=[pltpu.VMEM((bm, bn), jnp.float32)],
        compiler_params=pltpu.CompilerParams(
            dimension_semantics=("parallel", "parallel", "arbitrary"),
            vmem_limit_bytes=_VMEM_LIMIT),
    )(a, b)


# ----------------------------- RMSNorm (row-tiled) -----------------------------

def _rmsnorm_kernel(x_ref, w_ref, o_ref):
    x = x_ref[...].astype(jnp.float32)
    var = jnp.mean(x * x, axis=-1, keepdims=True)
    o_ref[...] = (x * jax.lax.rsqrt(var + 1e-6)
                  * w_ref[...].astype(jnp.float32)).astype(o_ref.dtype)


def rmsnorm(x2d, w, out_dtype=jnp.float32, tm=256):
    """x2d: (N, H), w: (1, H). Llama-style RMSNorm, eps=1e-6."""
    N, H = x2d.shape
    bm = _pick_block(N, tm, 8)
    return pl.pallas_call(
        _rmsnorm_kernel,
        out_shape=jax.ShapeDtypeStruct((N, H), out_dtype),
        grid=(N // bm,),
        in_specs=[pl.BlockSpec((bm, H), lambda i: (i, 0)),
                  pl.BlockSpec((1, H), lambda i: (0, 0))],
        out_specs=pl.BlockSpec((bm, H), lambda i: (i, 0)),
        compiler_params=pltpu.CompilerParams(
            dimension_semantics=("parallel",)),
    )(x2d, w)


# ----------------------------- SiLU(gate) * up -----------------------------

def _silu_mul_kernel(g_ref, u_ref, o_ref):
    g = g_ref[...].astype(jnp.float32)
    u = u_ref[...].astype(jnp.float32)
    o_ref[...] = (g * jax.nn.sigmoid(g) * u).astype(o_ref.dtype)


def silu_mul(g, u, out_dtype=jnp.bfloat16, tm=256, tn=512):
    N, I = g.shape
    bm = _pick_block(N, tm, 8)
    bn = _pick_block(I, tn, 128)
    return pl.pallas_call(
        _silu_mul_kernel,
        out_shape=jax.ShapeDtypeStruct((N, I), out_dtype),
        grid=(N // bm, I // bn),
        in_specs=[pl.BlockSpec((bm, bn), lambda i, j: (i, j)),
                  pl.BlockSpec((bm, bn), lambda i, j: (i, j))],
        out_specs=pl.BlockSpec((bm, bn), lambda i, j: (i, j)),
        compiler_params=pltpu.CompilerParams(
            dimension_semantics=("parallel", "parallel")),
    )(g, u)


# ------------------- flash-style causal attention with GQA -------------------

def _attn_kernel(q_ref, k_ref, v_ref, o_ref, m_sc, l_sc, acc_sc):
    _, G, bq, D = q_ref.shape
    _, bk, _ = k_ref.shape
    qi = pl.program_id(1)
    ki = pl.program_id(2)
    scale = 1.0 / (D ** 0.5)

    @pl.when(ki == 0)
    def _():
        m_sc[...] = jnp.full_like(m_sc, -1e30)
        l_sc[...] = jnp.zeros_like(l_sc)
        acc_sc[...] = jnp.zeros_like(acc_sc)

    # Skip KV tiles that are entirely above the causal diagonal.
    @pl.when(ki * bk <= qi * bq + (bq - 1))
    def _():
        k = k_ref[0]                                  # (bk, D) bf16
        v = v_ref[0]                                  # (bk, D) bf16
        q2 = q_ref[0].reshape(G * bq, D)              # whole GQA group at once
        s = jax.lax.dot_general(q2, k, (((1,), (1,)), ((), ())),
                                preferred_element_type=jnp.float32) * scale
        s = s.reshape(G, bq, bk)
        row = qi * bq + jax.lax.broadcasted_iota(jnp.int32, (bq, bk), 0)
        col = ki * bk + jax.lax.broadcasted_iota(jnp.int32, (bq, bk), 1)
        s = jnp.where((col <= row)[None, :, :], s, -jnp.inf)

        m_prev = m_sc[...]                            # (G, bq, 1)
        m_new = jnp.maximum(m_prev, jnp.max(s, axis=-1, keepdims=True))
        alpha = jnp.exp(m_prev - m_new)
        p = jnp.exp(s - m_new)                        # (G, bq, bk)
        l_sc[...] = alpha * l_sc[...] + jnp.sum(p, axis=-1, keepdims=True)
        pv = jax.lax.dot_general(p.reshape(G * bq, bk).astype(v.dtype), v,
                                 (((1,), (0,)), ((), ())),
                                 preferred_element_type=jnp.float32)
        acc_sc[...] = alpha * acc_sc[...] + pv.reshape(G, bq, D)
        m_sc[...] = m_new

    @pl.when(ki == pl.num_programs(2) - 1)
    def _():
        for g in range(G):                            # static unroll, lane-dense store
            inv = pl.reciprocal(l_sc[g], approx=True)     # (bq, 1)
            o_ref[0, :, g * D:(g + 1) * D] = (acc_sc[g] * inv).astype(o_ref.dtype)


def causal_attention(q, k, v, tq=256, tk=256):
    """q: (B, nH, T, D); k, v: (B, nKV, T, D) -> (B, T, nH*D).  is_causal=True."""
    B, nH, T, D = q.shape
    _, nKV, _, _ = k.shape
    G = nH // nKV
    bq = _pick_block(T, tq, 8)
    bk = _pick_block(T, tk, 8)
    qf = q.reshape(B, nKV, G, T, D).reshape(B * nKV, G, T, D).astype(jnp.bfloat16)
    kf = k.reshape(B * nKV, T, D).astype(jnp.bfloat16)
    vf = v.reshape(B * nKV, T, D).astype(jnp.bfloat16)
    out = pl.pallas_call(
        _attn_kernel,
        out_shape=jax.ShapeDtypeStruct((B * nKV, T, G * D), jnp.bfloat16),
        grid=(B * nKV, T // bq, T // bk),
        in_specs=[pl.BlockSpec((1, G, bq, D), lambda i, qi, ki: (i, 0, qi, 0)),
                  pl.BlockSpec((1, bk, D), lambda i, qi, ki: (i, ki, 0)),
                  pl.BlockSpec((1, bk, D), lambda i, qi, ki: (i, ki, 0))],
        out_specs=pl.BlockSpec((1, bq, G * D), lambda i, qi, ki: (i, qi, 0)),
        scratch_shapes=[pltpu.VMEM((G, bq, 1), jnp.float32),
                        pltpu.VMEM((G, bq, 1), jnp.float32),
                        pltpu.VMEM((G, bq, D), jnp.float32)],
        compiler_params=pltpu.CompilerParams(
            dimension_semantics=("parallel", "parallel", "arbitrary"),
            vmem_limit_bytes=_VMEM_LIMIT),
    )(qf, kf, vf)
    # (B, nKV, T, G, D) -> (B, T, nKV, G, D) -> (B, T, nH*D); head h = kv*G + g.
    out = out.reshape(B, nKV, T, G, D).transpose(0, 2, 1, 3, 4).reshape(B, T, nH * D)
    return out


# ------------------- fused lm_head + cross-entropy (online LSE) -------------------

def _lmhead_ce_kernel(h_ref, w_ref, lbl_ref, loss_ref, m_sc, l_sc, pick_sc):
    j = pl.program_id(1)

    @pl.when(j == 0)
    def _():
        m_sc[...] = jnp.full_like(m_sc, -1e30)
        l_sc[...] = jnp.zeros_like(l_sc)
        pick_sc[...] = jnp.zeros_like(pick_sc)

    x = jnp.dot(h_ref[...], w_ref[...], preferred_element_type=jnp.float32)  # (bm, bv)
    bm, bv = x.shape
    col = j * bv + jax.lax.broadcasted_iota(jnp.int32, (bm, bv), 1)
    lbl = lbl_ref[...]                                                        # (bm, 1)
    pick_sc[...] += jnp.sum(jnp.where(col == lbl, x, 0.0), axis=-1, keepdims=True)
    m_old = m_sc[...]
    m_new = jnp.maximum(m_old, jnp.max(x, axis=-1, keepdims=True))
    l_sc[...] = l_sc[...] * jnp.exp(m_old - m_new) + \
        jnp.sum(jnp.exp(x - m_new), axis=-1, keepdims=True)
    m_sc[...] = m_new

    @pl.when(j == pl.num_programs(1) - 1)
    def _():
        loss_ref[...] = m_sc[...] + jnp.log(l_sc[...]) - pick_sc[...]


def lm_head_cross_entropy(h2, w_lm, labels, ignore_index=-100, tm=256, tv=512):
    """Mean token CE of (h2 @ w_lm) vs labels; (N, V) logits never materialized."""
    N, H = h2.shape
    _, V = w_lm.shape
    bm = _pick_block(N, tm, 8)
    bv = _pick_block(V, tv, 128)
    lbl = labels.reshape(N, 1).astype(jnp.int32)
    per_row = pl.pallas_call(
        _lmhead_ce_kernel,
        out_shape=jax.ShapeDtypeStruct((N, 1), jnp.float32),
        grid=(N // bm, V // bv),
        in_specs=[pl.BlockSpec((bm, H), lambda i, j: (i, 0)),
                  pl.BlockSpec((H, bv), lambda i, j: (0, j)),
                  pl.BlockSpec((bm, 1), lambda i, j: (i, 0))],
        out_specs=pl.BlockSpec((bm, 1), lambda i, j: (i, 0)),
        scratch_shapes=[pltpu.VMEM((bm, 1), jnp.float32),
                        pltpu.VMEM((bm, 1), jnp.float32),
                        pltpu.VMEM((bm, 1), jnp.float32)],
        compiler_params=pltpu.CompilerParams(
            dimension_semantics=("parallel", "arbitrary"),
            vmem_limit_bytes=_VMEM_LIMIT),
    )(h2.astype(jnp.bfloat16), w_lm.astype(jnp.bfloat16), lbl)
    per_row = per_row[:, 0]
    valid = labels != ignore_index                     # torch CE ignore_index=-100
    count = jnp.maximum(jnp.sum(valid), 1).astype(jnp.float32)
    return jnp.sum(jnp.where(valid, per_row, 0.0)) / count


# ------------------------------- JAX glue ---------------------------------

def rope_cos_sin(seq_len, dim, base=10000.0):
    inv_freq = 1.0 / (base ** (jnp.arange(0, dim, 2, dtype=jnp.float32) / dim))
    t = jnp.arange(seq_len, dtype=jnp.float32)
    freqs = jnp.outer(t, inv_freq)
    emb = jnp.concatenate([freqs, freqs], axis=-1)
    return jnp.cos(emb), jnp.sin(emb)


def rotate_half(x):
    half = x.shape[-1] // 2
    return jnp.concatenate([-x[..., half:], x[..., :half]], axis=-1)


def apply_rope(x, cos, sin):
    # x: (B, nH, T, D); cos/sin: (T, D)
    return x * cos[None, None] + rotate_half(x) * sin[None, None]


def conv_logits(x, w, b):
    """Conv1d(H -> 1, kernel_size=2) over T: logit[b,t] = x[b,t].w0 + x[b,t+1].w1 + bias."""
    B, T, H = x.shape
    proj = matmul(x.reshape(B * T, H), w).reshape(B, T, 2)   # (H, 2) weight on MXU
    return proj[:, :-1, 0] + proj[:, 1:, 1] + b


def self_attn(x, layer, cfg, cos, sin):
    B, T, H = x.shape
    nH, nKV, D = cfg['heads'], cfg['kv_heads'], cfg['head_dim']
    x2 = x.reshape(B * T, H)
    qkv = matmul(x2, layer['w_qkv'])                         # fused q|k|v projection
    q_sz, kv_sz = nH * D, nKV * D
    q = qkv[:, :q_sz].reshape(B, T, nH, D).transpose(0, 2, 1, 3)
    k = qkv[:, q_sz:q_sz + kv_sz].reshape(B, T, nKV, D).transpose(0, 2, 1, 3)
    v = qkv[:, q_sz + kv_sz:].reshape(B, T, nKV, D).transpose(0, 2, 1, 3)
    q = apply_rope(q, cos, sin)
    k = apply_rope(k, cos, sin)
    o = causal_attention(q, k, v)                            # (B, T, nH*D)
    return matmul(o.reshape(B * T, nH * D), layer['wo']).reshape(B, T, H)


def mlp(x, layer, cfg):
    B, T, H = x.shape
    I = cfg['intermediate']
    x2 = x.reshape(B * T, H)
    gu = matmul(x2, layer['w_gate_up'])                      # fused gate|up projection
    act = silu_mul(gu[:, :I], gu[:, I:])
    return matmul(act, layer['w_down']).reshape(B, T, H)


def layer_forward(h, layer, cfg, cos, sin, return_logit, enable_sampling,
                  enable_det, merge_method):
    assert not (enable_sampling and enable_det), \
        'sampling and deterministic can not be conducted simutanously'
    logit = conv_logits(h, layer['conv_w'], layer['conv_b'])   # (B, T-1)
    # TODO(synk): prune() (token merging with add/avg/slerp) yields data-dependent
    # sequence lengths and is not expressible with static Pallas shapes; only the
    # no-pruning path is exercised here.
    assert not (enable_sampling or enable_det), 'pruning path not supported (dynamic shapes)'
    mask = None
    B, T, H = h.shape
    residual = h
    x = rmsnorm(h.reshape(B * T, H), layer['ln1'], out_dtype=jnp.bfloat16).reshape(B, T, H)
    x = self_attn(x, layer, cfg, cos, sin)
    h = residual + x
    residual = h
    x = rmsnorm(h.reshape(B * T, H), layer['ln2'], out_dtype=jnp.bfloat16).reshape(B, T, H)
    x = mlp(x, layer, cfg)
    h = residual + x
    return h, (logit if return_logit else None), mask


def decoder_forward(params, cfg, input_ids, labels, return_logits=(),
                    sample_pruning=(), deterministic_pruning=(),
                    trainable_tokens=None, merge_method='avg'):
    h = params['embed'][input_ids].astype(jnp.float32)         # (B, T, H)
    B, T, H = h.shape
    # RoPE table computed once per forward (hoisted out of the layer loop).
    cos, sin = rope_cos_sin(max(cfg['max_position_embeddings'], T), cfg['head_dim'])
    cos, sin = cos[:T], sin[:T]
    logits, masks = [], []
    for idx, layer in enumerate(params['layers']):
        h, lg, mk = layer_forward(h, layer, cfg, cos, sin,
                                  idx in return_logits,
                                  idx in sample_pruning,
                                  idx in deterministic_pruning,
                                  merge_method)
        logits.append(lg)
        masks.append(mk)
    h2 = rmsnorm(h.reshape(B * T, H), params['norm'],
                 out_dtype=jnp.bfloat16).reshape(B, T, H)
    if trainable_tokens is not None:
        h2 = h2[:, -trainable_tokens:, :]
        labels = labels[:, -trainable_tokens:]
    # lm_head + shifted cross-entropy fused (logits never materialized).
    h_shift = h2[:, :-1, :].reshape(-1, H)
    lbl_shift = labels[:, 1:].reshape(-1)
    loss = lm_head_cross_entropy(h_shift, params['lm_head'], lbl_shift)
    return loss, logits, masks


def init_params(key, cfg):
    H, V, L = cfg['hidden'], cfg['vocab'], cfg['layers']
    nH, nKV, D, I = cfg['heads'], cfg['kv_heads'], cfg['head_dim'], cfg['intermediate']
    keys = jax.random.split(key, 2 + L)

    def dense(k, shape, dtype=jnp.bfloat16):
        return (jax.random.normal(k, shape, jnp.float32) * 0.02).astype(dtype)

    params = {
        'embed': dense(keys[0], (V, H), jnp.float32),
        'norm': jnp.ones((1, H), jnp.float32),
        'lm_head': dense(keys[1], (H, V)),
        'layers': [],
    }
    for l in range(L):
        ks = jax.random.split(keys[2 + l], 8)
        wq = dense(ks[0], (H, nH * D))
        wk = dense(ks[1], (H, nKV * D))
        wv = dense(ks[2], (H, nKV * D))
        w_gate = dense(ks[4], (H, I))
        w_up = dense(ks[5], (H, I))
        params['layers'].append({
            'ln1': jnp.ones((1, H), jnp.float32),
            'ln2': jnp.ones((1, H), jnp.float32),
            'w_qkv': jnp.concatenate([wq, wk, wv], axis=1),        # fused q|k|v
            'wo': dense(ks[3], (nH * D, H)),
            'w_gate_up': jnp.concatenate([w_gate, w_up], axis=1),  # fused gate|up
            'w_down': dense(ks[6], (I, H)),
            'conv_w': dense(ks[7], (H, 2), jnp.float32),   # Conv(hidden, 1, kernel_size=2)
            'conv_b': jnp.zeros((), jnp.float32),
        })
    return params


if __name__ == "__main__":
    cfg = dict(hidden=64, vocab=64, layers=2, heads=4, kv_heads=2, head_dim=16,
               intermediate=128, max_position_embeddings=16)
    key = jax.random.PRNGKey(0)
    kp, ki, kl = jax.random.split(key, 3)
    params = init_params(kp, cfg)

    B, T = 2, 8
    input_ids = jax.random.randint(ki, (B, T), 0, cfg['vocab'])
    labels = jax.random.randint(kl, (B, T), 0, cfg['vocab'])

    loss, logits, masks = decoder_forward(
        params, cfg, input_ids, labels,
        return_logits=(0, 1),           # return conv logits of both layers
        sample_pruning=(),              # no-pruning path (static shapes)
        deterministic_pruning=(),
        trainable_tokens=None,
        merge_method='avg',
    )
    jax.block_until_ready(loss)
    for lg in logits:
        if lg is not None:
            jax.block_until_ready(lg)
    assert loss.shape == () and jnp.isfinite(loss)
    assert logits[0].shape == (B, T - 1)
    print("KERNEL_OK")
</pallas_src>

<mosaic_0001>
module attributes {stable_mosaic.version = 11 : i64} {
  func.func @_matmul_kernel(%arg0: i32, %arg1: i32, %arg2: i32, %arg3: memref<16x64xbf16, #tpu.memory_space<vmem>>, %arg4: memref<64x2xbf16, #tpu.memory_space<vmem>>, %arg5: memref<16x2xf32, #tpu.memory_space<vmem>>, %arg6: memref<16x2xf32, #tpu.memory_space<vmem>>) attributes {dimension_semantics = [#tpu.dimension_semantics<parallel>, #tpu.dimension_semantics<parallel>, #tpu.dimension_semantics<arbitrary>], iteration_bounds = array<i64: 1, 1, 1>, scalar_prefetch = 0 : i64, scratch_operands = 1 : i64, tpu.core_type = #tpu.core_type<tc>, window_params = [{transform_indices = @transform_0, window_bounds = array<i64: 16, 64>}, {transform_indices = @transform_1, window_bounds = array<i64: 64, 2>}, {transform_indices = @transform_2, window_bounds = array<i64: 16, 2>}]} {
    %c0_i32 = arith.constant 0 : i32
    %0 = arith.cmpi eq, %arg2, %c0_i32 : i32
    %1 = arith.extui %0 : i1 to i32
    %c0_i32_0 = arith.constant 0 : i32
    %2 = arith.cmpi ne, %1, %c0_i32_0 : i32
    scf.if %2 {
      %cst_10 = arith.constant 0.000000e+00 : f32
      %12 = vector.broadcast %cst_10 : f32 to vector<16x2xf32>
      %c0_11 = arith.constant 0 : index
      %c0_12 = arith.constant 0 : index
      %13 = vector.load %arg6[%c0_11, %c0_12] : memref<16x2xf32, #tpu.memory_space<vmem>>, vector<16x2xf32>
      tpu.vector_store %arg6[%c0_11, %c0_12], %12 {strides = array<i32>} : memref<16x2xf32, #tpu.memory_space<vmem>>, vector<16x2xf32>,
    } else {
    }
    %c0 = arith.constant 0 : index
    %c0_1 = arith.constant 0 : index
    %3 = vector.load %arg6[%c0, %c0_1] : memref<16x2xf32, #tpu.memory_space<vmem>>, vector<16x2xf32>
    %c0_2 = arith.constant 0 : index
    %c0_3 = arith.constant 0 : index
    %4 = vector.load %arg3[%c0_2, %c0_3] : memref<16x64xbf16, #tpu.memory_space<vmem>>, vector<16x64xbf16>
    %c0_4 = arith.constant 0 : index
    %c0_5 = arith.constant 0 : index
    %5 = vector.load %arg4[%c0_4, %c0_5] : memref<64x2xbf16, #tpu.memory_space<vmem>>, vector<64x2xbf16>
    %cst = arith.constant dense<0.000000e+00> : vector<16x2xf32>
    %6 = tpu.matmul %4, %5, %cst {dimension_numbers = #tpu.dot_dimension_numbers<[1], [0], [0], [1], [0, 0, 1, 1], [], []>} : vector<16x64xbf16>, vector<64x2xbf16>, vector<16x2xf32> -> vector<16x2xf32>
    %7 = arith.addf %3, %6 : vector<16x2xf32>
    %c0_6 = arith.constant 0 : index
    %c0_7 = arith.constant 0 : index
    %8 = vector.load %arg6[%c0_6, %c0_7] : memref<16x2xf32, #tpu.memory_space<vmem>>, vector<16x2xf32>
    tpu.vector_store %arg6[%c0_6, %c0_7], %7 {strides = array<i32>} : memref<16x2xf32, #tpu.memory_space<vmem>>, vector<16x2xf32>,
    %c0_i32_8 = arith.constant 0 : i32
    %9 = arith.cmpi eq, %arg2, %c0_i32_8 : i32
    %10 = arith.extui %9 : i1 to i32
    %c0_i32_9 = arith.constant 0 : i32
    %11 = arith.cmpi ne, %10, %c0_i32_9 : i32
    scf.if %11 {
      %c0_10 = arith.constant 0 : index
      %c0_11 = arith.constant 0 : index
      %12 = vector.load %arg6[%c0_10, %c0_11] : memref<16x2xf32, #tpu.memory_space<vmem>>, vector<16x2xf32>
      %c0_12 = arith.constant 0 : index
      %c0_13 = arith.constant 0 : index
      %13 = vector.load %arg5[%c0_12, %c0_13] : memref<16x2xf32, #tpu.memory_space<vmem>>, vector<16x2xf32>
      tpu.vector_store %arg5[%c0_12, %c0_13], %12 {strides = array<i32>} : memref<16x2xf32, #tpu.memory_space<vmem>>, vector<16x2xf32>,
    } else {
    }
    return
  }
  func.func @transform_0(%arg0: i32, %arg1: i32, %arg2: i32) -> (i32, i32) {
    %c0_i32 = arith.constant 0 : i32
    return %arg0, %arg2 : i32, i32
  }
  func.func @transform_1(%arg0: i32, %arg1: i32, %arg2: i32) -> (i32, i32) {
    %c0_i32 = arith.constant 0 : i32
    return %arg2, %arg1 : i32, i32
  }
  func.func @transform_2(%arg0: i32, %arg1: i32, %arg2: i32) -> (i32, i32) {
    %c0_i32 = arith.constant 0 : i32
    return %arg0, %arg1 : i32, i32
  }
}

</mosaic_0001>

<llo_original>
// kernel: tpu_custom_call.1
$region0: #{tpu_custom_call.1}
  #allocation0 [shape = 'u32[]', space=smem, size = 0x4, offset = 0x4, fixed_abs, tag = 'smem constant byte address 0x4 - core index']
  #allocation1 [shape = 'u32[144,128]{1,0:T(1,128)}', space=vmem, size = 0x12000, scoped, tag = 'internal scratch']
  #allocation2 [shape = 'f32[16,2]{1,0:T(8,128)}', space=vmem, size = 0x2000, scoped, tag = 'scratch operand']
  %s0 = inlined_call_operand.hbm [shape: bf16[16,64], index: 0, kind: input, shape index: {}]
  %s1 = inlined_call_operand.hbm [shape: bf16[64,2], index: 1, kind: input, shape index: {}]
  %s2 = inlined_call_operand.hbm [shape: f32[16,2], index: 2, kind: output, shape index: {}]
  %s3 = sld [smem:[#allocation0]]
  $region34: #{tpu_custom_call.1} parent=0
    _
  %s5 = ssub.s32 1, %s3
  %s6 = scalar_select 0, %s5, %s3
  $region1: #{tpu_custom_call.1} parent=0
    #allocation3 [shape = 'u8[4096]{0}', space=vmem, size = 0x1000, scoped, tag = 'input window, operand 0, single buffered']
    #allocation4 [shape = 's32[1]{0}', space=sflag, size = 0x4, scoped, tag = 'scoped memory for tpu_custom_call.1']
    #allocation5 [shape = 's32[1]{0}', space=sflag, size = 0x4, scoped, tag = 'scoped memory for tpu_custom_call.1']
    #allocation6 [shape = 'u8[16384]{0}', space=vmem, size = 0x4000, scoped, tag = 'input window, operand 1, single buffered']
    #allocation7 [shape = 's32[1]{0}', space=sflag, size = 0x4, scoped, tag = 'scoped memory for tpu_custom_call.1']
    #allocation8 [shape = 'u8[8192]{0}', space=vmem, size = 0x2000, scoped, tag = 'output window, operand 0, single buffered']
    %7 = vsyncpa [#allocation4], 0
    %8 = vsyncpa [#allocation7], 0
    %9 = vsyncpa [#allocation5], 0
    // Predicated region
    $region2: #{tpu_custom_call.1} parent=1 // pred_check
      _
    $region3: #{tpu_custom_call.1} parent=1 // pred_check_branch
      %11 = sbr.rel (0) target = $region5
    $region4: #{tpu_custom_call.1} parent=1 // pred_region
      %s13 = ssub.s32 128, 128
      %14 = vsyncadd [#allocation4], %s13
      %s15 = sshll.u32 [#allocation3], 4
      %s16 = int_to_ptr.vmem [resolvable:$true] %s15
      %21 = dma.hbm_to_vmem [thread:$0]  %s0, 128, %s16, [#allocation4], 64, 64, 4
    $region5: #{tpu_custom_call.1} parent=1 // pred_fallthru
      _
    // Predicated region
    $region6: #{tpu_custom_call.1} parent=1 // pred_check
      _
    $region7: #{tpu_custom_call.1} parent=1 // pred_check_branch
      %23 = sbr.rel (0) target = $region9
    $region8: #{tpu_custom_call.1} parent=1 // pred_region
      %s25 = ssub.s32 512, 512
      %26 = vsyncadd [#allocation7], %s25
      %s27 = sshll.u32 [#allocation6], 4
      %s28 = int_to_ptr.vmem [resolvable:$true] %s27
      %33 = dma.hbm_to_vmem [thread:$0]  %s1, 512, %s28, [#allocation7], 64, 64, 4
    $region9: #{tpu_custom_call.1} parent=1 // pred_fallthru
      _
    // Predicated region
    $region10: #{tpu_custom_call.1} parent=1 // pred_check
      _
    $region11: #{tpu_custom_call.1} parent=1 // pred_check_branch
      %35 = sbr.rel (0) target = $region13
    $region12: #{tpu_custom_call.1} parent=1 // pred_region
      %36 = dma.done [#allocation4], 128
    $region13: #{tpu_custom_call.1} parent=1 // pred_fallthru
      _
    // Predicated region
    $region14: #{tpu_custom_call.1} parent=1 // pred_check
      _
    $region15: #{tpu_custom_call.1} parent=1 // pred_check_branch
      %38 = sbr.rel (0) target = $region17
    $region16: #{tpu_custom_call.1} parent=1 // pred_region
      %39 = dma.done [#allocation7], 512
    $region17: #{tpu_custom_call.1} parent=1 // pred_fallthru
      _
    %p41 = scmp.eq.s32.totalorder 0, 0
    // Predicated region
    $region18: #{tpu_custom_call.1} parent=1 // pred_check
      %p42 = pneg %p41
    $region19: #{tpu_custom_call.1} parent=1 // pred_check_branch
      %44 = sbr.rel (%p42) target = $region21
    $region20: #{tpu_custom_call.1} parent=1 // pred_region
      %vm45 = vcmask 15360
      %46 = vst.msk [vmem:[#allocation2] sm:$0xff] %vm45, 0.0
      %47 = vst.msk [vmem:[#allocation2 + $0x8] sm:$0xff] %vm45, 0.0
    $region21: #{tpu_custom_call.1} parent=1 // pred_fallthru
      _
    %v48 = vld [vmem:[#allocation2] sm:$0xff]
    %v49 = vld [vmem:[#allocation2 + $0x8] sm:$0xff]
    %v50 = vld [vmem:[#allocation3] sm:$0xf]
    %v51 = vld [vmem:[#allocation3 + $0x4] sm:$0xf]
    %v52 = vld [vmem:[#allocation6] sm:$0xf]
    %v53 = vld [vmem:[#allocation6 + $0x4] sm:$0xf]
    %v54 = vld [vmem:[#allocation6 + $0x8] sm:$0xf]
    %v55 = vld [vmem:[#allocation6 + $0xc] sm:$0xf]
    %v56 = vld [vmem:[#allocation6 + $0x10] sm:$0xf]
    %v57 = vld [vmem:[#allocation6 + $0x14] sm:$0xf]
    %v58 = vld [vmem:[#allocation6 + $0x18] sm:$0xf]
    %v59 = vld [vmem:[#allocation6 + $0x1c] sm:$0xf]
    %v62 = vunpack.c.l.b16 %v50
    %v63 = vunpack.c.l.b16 %v51
    %v64 = vpack.c.b16 %v63, %v62
    %v73 = vunpack.c.l.b16 %v52
    %v74 = vunpack.c.l.b16 %v53
    %v75 = vunpack.c.l.b16 %v54
    %v76 = vunpack.c.l.b16 %v55
    %v77 = vunpack.c.l.b16 %v56
    %v78 = vunpack.c.l.b16 %v57
    %v79 = vunpack.c.l.b16 %v58
    %v80 = vunpack.c.l.b16 %v59
    %v81 = vpack.c.b16 %v74, %v73
    %v82 = vpack.c.b16 %v76, %v75
    %v83 = vpack.c.b16 %v78, %v77
    %v84 = vpack.c.b16 %v80, %v79
    %vm89 = vcmask 523264
    %v91 = vsel %vm89, %v64, 0
    %93 = vmatprep.subr.bf16.mxu0 0
    %94 = vmatpush1.bf16.msra.mxu0 %v81
    %95 = vmatprep.subr.bf16.mxu0 0
    %96 = vmatpush1.bf16.msra.mxu0 %v82
    %97 = vmatprep.subr.bf16.mxu0 0
    %98 = vmatpush1.bf16.msra.mxu0 %v83
    %99 = vmatprep.subr.bf16.mxu0 0
    %100 = vmatpush1.bf16.msra.mxu0 %v84
    %101 = vmatprep.subr.bf16.mxu0 0
    %102 = vmatpush1.bf16.msra.mxu0 0
    %103 = vmatprep.subr.bf16.mxu0 0
    %104 = vmatpush1.bf16.msra.mxu0 0
    %105 = vmatprep.subr.bf16.mxu0 0
    %106 = vmatpush1.bf16.msra.mxu0 0
    %107 = vmatprep.subr.bf16.mxu0 0
    %108 = vmatpush1.bf16.msra.mxu0 0
    %109 = vmatprep.subr.bf16.mxu0 0
    %110 = vmatpush1.bf16.msra.mxu0 0
    %111 = vmatprep.subr.bf16.mxu0 0
    %112 = vmatpush1.bf16.msra.mxu0 0
    %113 = vmatprep.subr.bf16.mxu0 0
    %114 = vmatpush1.bf16.msra.mxu0 0
    %115 = vmatprep.subr.bf16.mxu0 0
    %116 = vmatpush1.bf16.msra.mxu0 0
    %117 = vmatprep.subr.bf16.mxu0 0
    %118 = vmatpush1.bf16.msra.mxu0 0
    %119 = vmatprep.subr.bf16.mxu0 0
    %120 = vmatpush1.bf16.msra.mxu0 0
    %121 = vmatprep.subr.bf16.mxu0 0
    %122 = vmatpush1.bf16.msra.mxu0 0
    %123 = vmatprep.subr.bf16.mxu0 0
    %124 = vmatpush1.bf16.msra.mxu0 0
    %125 = vmatprep.mubr.bf16.mxu0 0
    %126 = vmatmul.mubr.bf16.gmra.mrb[0].mxu0 %v91
    %v127 = vpop.f32.mrb[0].mxu0
    %v128 = vadd.f32 0.0, %v127
    %v129 = vpop.f32.mrb[0].mxu0
    %v130 = vpop.f32.mrb[0].mxu0
    %v131 = vadd.f32 0.0, %v130
    %v132 = vpop.f32.mrb[0].mxu0
    %133 = vdwg.mxu0
    %v134 = vadd.f32 %v48, %v128
    %v135 = vadd.f32 %v49, %v131
    %vm136 = vcmask 15360
    %137 = vst.msk [vmem:[#allocation2] sm:$0xff] %vm136, %v134
    %138 = vst.msk [vmem:[#allocation2 + $0x8] sm:$0xff] %vm136, %v135
    // Predicated region
    $region22: #{tpu_custom_call.1} parent=1 // pred_check
      %p139 = pneg %p41
    $region23: #{tpu_custom_call.1} parent=1 // pred_check_branch
      %141 = sbr.rel (%p139) target = $region25
    $region24: #{tpu_custom_call.1} parent=1 // pred_region
      %v142 = vld [vmem:[#allocation2] sm:$0xff]
      %v143 = vld [vmem:[#allocation2 + $0x8] sm:$0xff]
      %144 = vst.msk [vmem:[#allocation8] sm:$0xff] %vm136, %v142
      %145 = vst.msk [vmem:[#allocation8 + $0x8] sm:$0xff] %vm136, %v143
    $region25: #{tpu_custom_call.1} parent=1 // pred_fallthru
      _
    // Predicated region
    $region26: #{tpu_custom_call.1} parent=1 // pred_check
      _
    $region27: #{tpu_custom_call.1} parent=1 // pred_check_branch
      %147 = sbr.rel (0) target = $region29
    $region28: #{tpu_custom_call.1} parent=1 // pred_region
      %s149 = ssub.s32 256, 256
      %150 = vsyncadd [#allocation5], %s149
      %s151 = sshll.u32 [#allocation8], 4
      %s152 = int_to_ptr.vmem [resolvable:$true] %s151
      %157 = dma.vmem_to_hbm [thread:$0]  %s152, 256, %s2, [#allocation5], 128, 128, 8
    $region29: #{tpu_custom_call.1} parent=1 // pred_fallthru
      _
    // Predicated region
    $region30: #{tpu_custom_call.1} parent=1 // pred_check
      _
    $region31: #{tpu_custom_call.1} parent=1 // pred_check_branch
      %159 = sbr.rel (0) target = $region33
    $region32: #{tpu_custom_call.1} parent=1 // pred_region
      %160 = dma.done [#allocation5], 256
    $region33: #{tpu_custom_call.1} parent=1 // pred_fallthru
      _
    %161 = vsyncpa [#allocation4], 1
    %162 = vsyncpa [#allocation7], 1
    %163 = vsyncpa [#allocation5], 1

</llo_original>
